<compile_context>
chip_gen: v5e
topology: v5e:2x2
jax: 0.10.0
libtpu: 0.0.40
codegen_flags: <defaults>
</compile_context>

<pallas_src>
import jax
import jax.numpy as jnp
import numpy as np
from jax.experimental import pallas as pl
from jax.experimental.pallas import tpu as pltpu

MAX_TILE_PIX = 16384   # lane-axis pixels per grid step (multiple of 128)
FEAT_CHUNK = 2048      # lane sub-chunk bounding the (F, chunk) feature temporaries


def _round_up(v, m):
    return ((v + m - 1) // m) * m


def _make_kernel(num_chunks, feat_chunk):
    """Grid = (N, S, P); axes 0/1 'parallel' (batch x pixel-shard), axis 2 'arbitrary'."""

    def kernel(x_ref, y_ref, wft_ref, myuvt_ref, fred_ref, out_ref,
               acc_l1, acc_f, acc_yuv):
        # x_ref, y_ref : (1, C, T)  channels-on-sublanes / pixels-on-lanes, values in [-1, 1]
        # wft_ref      : (F, C)     synthetic 1x1-conv feature weights, transposed
        # myuvt_ref    : (3G, C)    block-diagonal RGB->YUV matrix, transposed
        # fred_ref     : (8, F)     MXU reducer (row 0 = ones) for the F-axis sum
        # out_ref      : (1, 8, 128) per-(batch, shard) output block; rows 0/1/2 = sums
        # acc_*        : (1, 1) VMEM scalar accumulators, resident across the pixel axis
        p = pl.program_id(2)

        @pl.when(p == 0)
        def _init():
            acc_l1[...] = jnp.zeros_like(acc_l1)
            acc_f[...] = jnp.zeros_like(acc_f)
            acc_yuv[...] = jnp.zeros_like(acc_yuv)

        x = x_ref[0].astype(jnp.float32)          # (C, T)
        y = y_ref[0].astype(jnp.float32)

        # unnorm: (x + 1) / 2  (needed by the nonlinear feature branch; d reused by L1/YUV)
        xu = x * 0.5 + 0.5
        yu = y * 0.5 + 0.5
        d = xu - yu                               # (C, T)

        # --- nn.L1Loss partial: in-step reduce to a scalar (no big accumulator traffic) ---
        acc_l1[...] = acc_l1[...] + jnp.sum(jnp.abs(d), keepdims=True)

        # --- YuvLoss partial: YUV is linear, so transform the difference once ---
        dyuv = jnp.dot(myuvt_ref[...], d, preferred_element_type=jnp.float32)   # (3G, T)
        acc_yuv[...] = acc_yuv[...] + jnp.sum(jnp.abs(dyuv), keepdims=True)

        # --- FeatureLoss partial: lane sub-chunks; F-axis sum on the MXU via fred ---
        s_feat = jnp.zeros((1, 1), jnp.float32)
        for ci in range(num_chunks):              # small static trip count (tile/feat_chunk)
            lo = ci * feat_chunk                  # static, 128-aligned -> free value slice
            xc = xu[:, lo:lo + feat_chunk]
            yc = yu[:, lo:lo + feat_chunk]
            fx = jnp.maximum(
                jnp.dot(wft_ref[...], xc, preferred_element_type=jnp.float32), 0.0)
            fy = jnp.maximum(
                jnp.dot(wft_ref[...], yc, preferred_element_type=jnp.float32), 0.0)
            ad = jnp.abs(fx - fy)                 # (F, feat_chunk)
            # row 0 of r = sum over F (rows 1..7 are zero) -> tiny VPU reduce afterwards
            r = jnp.dot(fred_ref[...], ad, preferred_element_type=jnp.float32)  # (8, chunk)
            s_feat = s_feat + jnp.sum(r, keepdims=True)
        acc_f[...] = acc_f[...] + s_feat

        @pl.when(p == pl.num_programs(2) - 1)
        def _finalize():
            sub = jax.lax.broadcasted_iota(jnp.int32, (8, 128), 0)
            out_ref[0] = jnp.where(sub == 0, acc_l1[...],
                         jnp.where(sub == 1, acc_f[...],
                         jnp.where(sub == 2, acc_yuv[...], jnp.float32(0.0))))

    return kernel


def pip_loss(x_nchw, y_nchw, wf, myuv):
    """x_nchw, y_nchw: (N, C, H, W) in [-1, 1]. Returns scalar loss (float32)."""
    N, C, H, W = x_nchw.shape
    F = wf.shape[1]
    G = C // 3
    HW = H * W

    # Lane-dense pixel tile (multiple of 128), as large as VMEM comfortably allows.
    tile = min(MAX_TILE_PIX, _round_up(HW, 128))
    HWp = _round_up(HW, tile)

    # Feature-branch lane sub-chunk (must divide the tile).
    fc = min(FEAT_CHUNK, tile)
    if tile % fc != 0:
        fc = tile
    num_chunks = tile // fc

    # Free reshape (contiguous): NCHW -> (N, C, H*W). No transpose, no extra HBM pass.
    x3 = x_nchw.reshape(N, C, HW)
    y3 = y_nchw.reshape(N, C, HW)
    if HWp != HW:
        # Zero-padding BOTH x and y -> xu == yu == 0.5 in padded pixels -> contributes 0
        # to every |.| sum.  (Load-bearing: do not pad only one operand.)
        pad = HWp - HW
        x3 = jnp.pad(x3, ((0, 0), (0, 0), (0, pad)))
        y3 = jnp.pad(y3, ((0, 0), (0, 0), (0, pad)))

    wft = jnp.asarray(wf, jnp.float32).T          # (F, C)
    myuvt = jnp.asarray(myuv, jnp.float32).T      # (3G, C)
    fred = jnp.zeros((8, F), jnp.float32).at[0].set(1.0)   # MXU F-axis reducer

    num_tiles = HWp // tile
    # Extra 'parallel' pixel-shard axis so both v7x TensorCores stay busy at small N.
    S = 2 if (num_tiles % 2 == 0 and num_tiles >= 2) else 1
    P = num_tiles // S

    kernel = _make_kernel(num_chunks, fc)

    sums_raw = pl.pallas_call(
        kernel,
        out_shape=jax.ShapeDtypeStruct((N * S, 8, 128), jnp.float32),
        grid_spec=pltpu.PrefetchScalarGridSpec(
            num_scalar_prefetch=0,
            grid=(N, S, P),
            in_specs=[
                pl.BlockSpec((1, C, tile), lambda n, s, p: (n, 0, s * P + p)),
                pl.BlockSpec((1, C, tile), lambda n, s, p: (n, 0, s * P + p)),
                pl.BlockSpec((F, C), lambda n, s, p: (0, 0)),
                pl.BlockSpec((3 * G, C), lambda n, s, p: (0, 0)),
                pl.BlockSpec((8, F), lambda n, s, p: (0, 0)),
            ],
            out_specs=pl.BlockSpec((1, 8, 128), lambda n, s, p: (n * S + s, 0, 0)),
            scratch_shapes=[
                pltpu.VMEM((1, 1), jnp.float32),   # L1 sum
                pltpu.VMEM((1, 1), jnp.float32),   # feature sum
                pltpu.VMEM((1, 1), jnp.float32),   # YUV sum
            ],
        ),
        compiler_params=pltpu.CompilerParams(
            dimension_semantics=("parallel", "parallel", "arbitrary"),
            vmem_limit_bytes=32 * 1024 * 1024),
    )(x3, y3, wft, myuvt, fred)

    # Per-(batch, shard) partial sums live at [:, 0:3, 0]; finish the tiny reduction in JAX.
    total = jnp.sum(sums_raw[:, 0:3, 0], axis=0)  # (3,)

    R = N * HW
    loss_l1 = total[0] / (R * C)       # L1Loss: mean over N*C*H*W elements
    loss_feat = total[1] / (R * F)     # FeatureLoss: mean over N*F*H*W feature elements
    loss_yuv = total[2] / (R * 3)      # sum over G groups of per-group means
    return loss_l1 + loss_feat + loss_yuv


# ----------------------- pure-JAX reference (for verification) -----------------------
def ref_pip_loss(x_nchw, y_nchw, wf, m3):
    xu = (x_nchw + 1.0) * 0.5
    yu = (y_nchw + 1.0) * 0.5
    loss = jnp.mean(jnp.abs(xu - yu))
    xp = jnp.transpose(xu, (0, 2, 3, 1))  # NHWC
    yp = jnp.transpose(yu, (0, 2, 3, 1))
    fx = jax.nn.relu(xp @ wf)
    fy = jax.nn.relu(yp @ wf)
    loss += jnp.mean(jnp.abs(fx - fy))
    C = x_nchw.shape[1]
    for i in range(C // 3):
        xg = xp[..., 3 * i:3 * i + 3]
        yg = yp[..., 3 * i:3 * i + 3]
        loss += jnp.mean(jnp.abs(xg @ m3 - yg @ m3))
    return loss


if __name__ == "__main__":
    key = jax.random.PRNGKey(0)
    k1, k2, k3 = jax.random.split(key, 3)

    N, C, H, W = 2, 6, 16, 16   # C=6 -> two 3-channel groups for YuvLoss
    F = 32                      # synthetic feature channels

    x = jax.random.uniform(k1, (N, C, H, W), jnp.float32, minval=-1.0, maxval=1.0)
    y = jax.random.uniform(k2, (N, C, H, W), jnp.float32, minval=-1.0, maxval=1.0)

    # Deterministic synthetic feature-extractor weights (stand-in for VGG features).
    wf = (jax.random.normal(k3, (C, F), jnp.float32) / jnp.sqrt(jnp.float32(C))).astype(jnp.float32)

    # RGB -> YUV matrix (rows = RGB in, cols = YUV out), block-diagonal over groups.
    m3 = jnp.array(
        [[0.299, -0.14713, 0.615],
         [0.587, -0.28886, -0.51499],
         [0.114, 0.436, -0.10001]], dtype=jnp.float32)
    G = C // 3
    myuv = np.zeros((C, 3 * G), dtype=np.float32)
    for i in range(G):
        myuv[3 * i:3 * i + 3, 3 * i:3 * i + 3] = np.asarray(m3)
    myuv = jnp.asarray(myuv)

    loss = pip_loss(x, y, wf, myuv)
    loss = jax.block_until_ready(loss)

    ref = jax.block_until_ready(ref_pip_loss(x, y, wf, m3))
    np.testing.assert_allclose(np.asarray(loss), np.asarray(ref), rtol=1e-4, atol=1e-5)

    print("KERNEL_OK")
</pallas_src>

<mosaic_0001>
module attributes {stable_mosaic.version = 11 : i64} {
  func.func @kernel(%arg0: i32, %arg1: i32, %arg2: i32, %arg3: memref<1x6x256xf32, #tpu.memory_space<vmem>>, %arg4: memref<1x6x256xf32, #tpu.memory_space<vmem>>, %arg5: memref<32x6xf32, #tpu.memory_space<vmem>>, %arg6: memref<6x6xf32, #tpu.memory_space<vmem>>, %arg7: memref<8x32xf32, #tpu.memory_space<vmem>>, %arg8: memref<1x8x128xf32, #tpu.memory_space<vmem>>, %arg9: memref<1x1xf32, #tpu.memory_space<vmem>>, %arg10: memref<1x1xf32, #tpu.memory_space<vmem>>, %arg11: memref<1x1xf32, #tpu.memory_space<vmem>>) attributes {dimension_semantics = [#tpu.dimension_semantics<parallel>, #tpu.dimension_semantics<parallel>, #tpu.dimension_semantics<arbitrary>], iteration_bounds = array<i64: 2, 1, 1>, scalar_prefetch = 0 : i64, scratch_operands = 3 : i64, tpu.core_type = #tpu.core_type<tc>, window_params = [{transform_indices = @transform_0, window_bounds = array<i64: 1, 6, 256>}, {transform_indices = @transform_1, window_bounds = array<i64: 1, 6, 256>}, {pipeline_mode = #tpu.pipeline_mode<synchronous>, transform_indices = @transform_2, window_bounds = array<i64: 32, 6>}, {pipeline_mode = #tpu.pipeline_mode<synchronous>, transform_indices = @transform_3, window_bounds = array<i64: 6, 6>}, {pipeline_mode = #tpu.pipeline_mode<synchronous>, transform_indices = @transform_4, window_bounds = array<i64: 8, 32>}, {transform_indices = @transform_5, window_bounds = array<i64: 1, 8, 128>}]} {
    %c0_i32 = arith.constant 0 : i32
    %0 = arith.cmpi eq, %arg2, %c0_i32 : i32
    %1 = arith.extui %0 : i1 to i32
    %c0_i32_0 = arith.constant 0 : i32
    %2 = arith.cmpi ne, %1, %c0_i32_0 : i32
    scf.if %2 {
      %cst_41 = arith.constant 0.000000e+00 : f32
      %61 = vector.broadcast %cst_41 : f32 to vector<1x1xf32>
      %c0_42 = arith.constant 0 : index
      %c0_43 = arith.constant 0 : index
      %62 = vector.load %arg9[%c0_42, %c0_43] : memref<1x1xf32, #tpu.memory_space<vmem>>, vector<1x1xf32>
      tpu.vector_store %arg9[%c0_42, %c0_43], %61 {strides = array<i32>} : memref<1x1xf32, #tpu.memory_space<vmem>>, vector<1x1xf32>,
      %cst_44 = arith.constant 0.000000e+00 : f32
      %63 = vector.broadcast %cst_44 : f32 to vector<1x1xf32>
      %c0_45 = arith.constant 0 : index
      %c0_46 = arith.constant 0 : index
      %64 = vector.load %arg10[%c0_45, %c0_46] : memref<1x1xf32, #tpu.memory_space<vmem>>, vector<1x1xf32>
      tpu.vector_store %arg10[%c0_45, %c0_46], %63 {strides = array<i32>} : memref<1x1xf32, #tpu.memory_space<vmem>>, vector<1x1xf32>,
      %cst_47 = arith.constant 0.000000e+00 : f32
      %65 = vector.broadcast %cst_47 : f32 to vector<1x1xf32>
      %c0_48 = arith.constant 0 : index
      %c0_49 = arith.constant 0 : index
      %66 = vector.load %arg11[%c0_48, %c0_49] : memref<1x1xf32, #tpu.memory_space<vmem>>, vector<1x1xf32>
      tpu.vector_store %arg11[%c0_48, %c0_49], %65 {strides = array<i32>} : memref<1x1xf32, #tpu.memory_space<vmem>>, vector<1x1xf32>,
    } else {
    }
    %c0 = arith.constant 0 : index
    %c0_1 = arith.constant 0 : index
    %c0_2 = arith.constant 0 : index
    %3 = vector.load %arg3[%c0, %c0_1, %c0_2] : memref<1x6x256xf32, #tpu.memory_space<vmem>>, vector<1x6x256xf32>
    %4 = vector.shape_cast %3 : vector<1x6x256xf32> to vector<6x256xf32>
    %c0_3 = arith.constant 0 : index
    %c0_4 = arith.constant 0 : index
    %c0_5 = arith.constant 0 : index
    %5 = vector.load %arg4[%c0_3, %c0_4, %c0_5] : memref<1x6x256xf32, #tpu.memory_space<vmem>>, vector<1x6x256xf32>
    %6 = vector.shape_cast %5 : vector<1x6x256xf32> to vector<6x256xf32>
    %cst = arith.constant 5.000000e-01 : f32
    %7 = vector.broadcast %cst : f32 to vector<6x256xf32>
    %8 = arith.mulf %4, %7 : vector<6x256xf32>
    %cst_6 = arith.constant 5.000000e-01 : f32
    %9 = vector.broadcast %cst_6 : f32 to vector<6x256xf32>
    %10 = arith.addf %8, %9 : vector<6x256xf32>
    %cst_7 = arith.constant 5.000000e-01 : f32
    %11 = vector.broadcast %cst_7 : f32 to vector<6x256xf32>
    %12 = arith.mulf %6, %11 : vector<6x256xf32>
    %cst_8 = arith.constant 5.000000e-01 : f32
    %13 = vector.broadcast %cst_8 : f32 to vector<6x256xf32>
    %14 = arith.addf %12, %13 : vector<6x256xf32>
    %15 = arith.subf %10, %14 : vector<6x256xf32>
    %c0_9 = arith.constant 0 : index
    %c0_10 = arith.constant 0 : index
    %16 = vector.load %arg9[%c0_9, %c0_10] : memref<1x1xf32, #tpu.memory_space<vmem>>, vector<1x1xf32>
    %17 = math.absf %15 : vector<6x256xf32>
    %18 = vector.shape_cast %17 : vector<6x256xf32> to vector<1x6x256xf32>
    %cst_11 = arith.constant dense<0.000000e+00> : vector<1xf32>
    %19 = vector.multi_reduction <add>, %18, %cst_11 [1, 2] : vector<1x6x256xf32> to vector<1xf32>
    %20 = vector.shape_cast %19 : vector<1xf32> to vector<1x1x1xf32>
    %21 = vector.extract %20[0, 0, 0] : f32 from vector<1x1x1xf32>
    %22 = vector.broadcast %21 : f32 to vector<1x1xf32>
    %23 = arith.addf %16, %22 : vector<1x1xf32>
    %c0_12 = arith.constant 0 : index
    %c0_13 = arith.constant 0 : index
    %24 = vector.load %arg9[%c0_12, %c0_13] : memref<1x1xf32, #tpu.memory_space<vmem>>, vector<1x1xf32>
    tpu.vector_store %arg9[%c0_12, %c0_13], %23 {strides = array<i32>} : memref<1x1xf32, #tpu.memory_space<vmem>>, vector<1x1xf32>,
    %c0_14 = arith.constant 0 : index
    %c0_15 = arith.constant 0 : index
    %25 = vector.load %arg6[%c0_14, %c0_15] : memref<6x6xf32, #tpu.memory_space<vmem>>, vector<6x6xf32>
    %cst_16 = arith.constant dense<0.000000e+00> : vector<6x256xf32>
    %26 = tpu.matmul %25, %15, %cst_16 {dimension_numbers = #tpu.dot_dimension_numbers<[1], [0], [0], [1], [0, 0, 1, 1], [], []>} : vector<6x6xf32>, vector<6x256xf32>, vector<6x256xf32> -> vector<6x256xf32>
    %c0_17 = arith.constant 0 : index
    %c0_18 = arith.constant 0 : index
    %27 = vector.load %arg11[%c0_17, %c0_18] : memref<1x1xf32, #tpu.memory_space<vmem>>, vector<1x1xf32>
    %28 = math.absf %26 : vector<6x256xf32>
    %29 = vector.shape_cast %28 : vector<6x256xf32> to vector<1x6x256xf32>
    %cst_19 = arith.constant dense<0.000000e+00> : vector<1xf32>
    %30 = vector.multi_reduction <add>, %29, %cst_19 [1, 2] : vector<1x6x256xf32> to vector<1xf32>
    %31 = vector.shape_cast %30 : vector<1xf32> to vector<1x1x1xf32>
    %32 = vector.extract %31[0, 0, 0] : f32 from vector<1x1x1xf32>
    %33 = vector.broadcast %32 : f32 to vector<1x1xf32>
    %34 = arith.addf %27, %33 : vector<1x1xf32>
    %c0_20 = arith.constant 0 : index
    %c0_21 = arith.constant 0 : index
    %35 = vector.load %arg11[%c0_20, %c0_21] : memref<1x1xf32, #tpu.memory_space<vmem>>, vector<1x1xf32>
    tpu.vector_store %arg11[%c0_20, %c0_21], %34 {strides = array<i32>} : memref<1x1xf32, #tpu.memory_space<vmem>>, vector<1x1xf32>,
    %cst_22 = arith.constant 0.000000e+00 : f32
    %36 = vector.broadcast %cst_22 : f32 to vector<1x1xf32>
    %c0_23 = arith.constant 0 : index
    %c0_24 = arith.constant 0 : index
    %37 = vector.load %arg5[%c0_23, %c0_24] : memref<32x6xf32, #tpu.memory_space<vmem>>, vector<32x6xf32>
    %cst_25 = arith.constant dense<0.000000e+00> : vector<32x256xf32>
    %38 = tpu.matmul %37, %10, %cst_25 {dimension_numbers = #tpu.dot_dimension_numbers<[1], [0], [0], [1], [0, 0, 1, 1], [], []>} : vector<32x6xf32>, vector<6x256xf32>, vector<32x256xf32> -> vector<32x256xf32>
    %cst_26 = arith.constant 0.000000e+00 : f32
    %39 = vector.broadcast %cst_26 : f32 to vector<32x256xf32>
    %40 = arith.maximumf %38, %39 : vector<32x256xf32>
    %c0_27 = arith.constant 0 : index
    %c0_28 = arith.constant 0 : index
    %41 = vector.load %arg5[%c0_27, %c0_28] : memref<32x6xf32, #tpu.memory_space<vmem>>, vector<32x6xf32>
    %cst_29 = arith.constant dense<0.000000e+00> : vector<32x256xf32>
    %42 = tpu.matmul %41, %14, %cst_29 {dimension_numbers = #tpu.dot_dimension_numbers<[1], [0], [0], [1], [0, 0, 1, 1], [], []>} : vector<32x6xf32>, vector<6x256xf32>, vector<32x256xf32> -> vector<32x256xf32>
    %cst_30 = arith.constant 0.000000e+00 : f32
    %43 = vector.broadcast %cst_30 : f32 to vector<32x256xf32>
    %44 = arith.maximumf %42, %43 : vector<32x256xf32>
    %45 = arith.subf %40, %44 : vector<32x256xf32>
    %46 = math.absf %45 : vector<32x256xf32>
    %c0_31 = arith.constant 0 : index
    %c0_32 = arith.constant 0 : index
    %47 = vector.load %arg7[%c0_31, %c0_32] : memref<8x32xf32, #tpu.memory_space<vmem>>, vector<8x32xf32>
    %cst_33 = arith.constant dense<0.000000e+00> : vector<8x256xf32>
    %48 = tpu.matmul %47, %46, %cst_33 {dimension_numbers = #tpu.dot_dimension_numbers<[1], [0], [0], [1], [0, 0, 1, 1], [], []>} : vector<8x32xf32>, vector<32x256xf32>, vector<8x256xf32> -> vector<8x256xf32>
    %49 = vector.shape_cast %48 : vector<8x256xf32> to vector<1x8x256xf32>
    %cst_34 = arith.constant dense<0.000000e+00> : vector<1xf32>
    %50 = vector.multi_reduction <add>, %49, %cst_34 [1, 2] : vector<1x8x256xf32> to vector<1xf32>
    %51 = vector.shape_cast %50 : vector<1xf32> to vector<1x1x1xf32>
    %52 = vector.extract %51[0, 0, 0] : f32 from vector<1x1x1xf32>
    %53 = vector.broadcast %52 : f32 to vector<1x1xf32>
    %54 = arith.addf %36, %53 : vector<1x1xf32>
    %c0_35 = arith.constant 0 : index
    %c0_36 = arith.constant 0 : index
    %55 = vector.load %arg10[%c0_35, %c0_36] : memref<1x1xf32, #tpu.memory_space<vmem>>, vector<1x1xf32>
    %56 = arith.addf %55, %54 : vector<1x1xf32>
    %c0_37 = arith.constant 0 : index
    %c0_38 = arith.constant 0 : index
    %57 = vector.load %arg10[%c0_37, %c0_38] : memref<1x1xf32, #tpu.memory_space<vmem>>, vector<1x1xf32>
    tpu.vector_store %arg10[%c0_37, %c0_38], %56 {strides = array<i32>} : memref<1x1xf32, #tpu.memory_space<vmem>>, vector<1x1xf32>,
    %c0_i32_39 = arith.constant 0 : i32
    %58 = arith.cmpi eq, %arg2, %c0_i32_39 : i32
    %59 = arith.extui %58 : i1 to i32
    %c0_i32_40 = arith.constant 0 : i32
    %60 = arith.cmpi ne, %59, %c0_i32_40 : i32
    scf.if %60 {
      %61 = tpu.iota {dimensions = array<i32: 0>} : vector<8x128xi32>
      %c0_i32_41 = arith.constant 0 : i32
      %62 = vector.broadcast %c0_i32_41 : i32 to vector<8x128xi32>
      %63 = arith.cmpi eq, %61, %62 : vector<8x128xi32>
      %c0_42 = arith.constant 0 : index
      %c0_43 = arith.constant 0 : index
      %64 = vector.load %arg9[%c0_42, %c0_43] : memref<1x1xf32, #tpu.memory_space<vmem>>, vector<1x1xf32>
      %c1_i32 = arith.constant 1 : i32
      %65 = vector.broadcast %c1_i32 : i32 to vector<8x128xi32>
      %66 = arith.cmpi eq, %61, %65 : vector<8x128xi32>
      %c0_44 = arith.constant 0 : index
      %c0_45 = arith.constant 0 : index
      %67 = vector.load %arg10[%c0_44, %c0_45] : memref<1x1xf32, #tpu.memory_space<vmem>>, vector<1x1xf32>
      %c2_i32 = arith.constant 2 : i32
      %68 = vector.broadcast %c2_i32 : i32 to vector<8x128xi32>
      %69 = arith.cmpi eq, %61, %68 : vector<8x128xi32>
      %c0_46 = arith.constant 0 : index
      %c0_47 = arith.constant 0 : index
      %70 = vector.load %arg11[%c0_46, %c0_47] : memref<1x1xf32, #tpu.memory_space<vmem>>, vector<1x1xf32>
      %cst_48 = arith.constant 0.000000e+00 : f32
      %71 = vector.shape_cast %70 : vector<1x1xf32> to vector<1x1xf32>
      %72 = vector.broadcast %71 : vector<1x1xf32> to vector<8x128xf32>
      %73 = vector.broadcast %cst_48 : f32 to vector<8x128xf32>
      %74 = arith.select %69, %72, %73 : vector<8x128xi1>, vector<8x128xf32>
      %75 = vector.shape_cast %67 : vector<1x1xf32> to vector<1x1xf32>
      %76 = vector.broadcast %75 : vector<1x1xf32> to vector<8x128xf32>
      %77 = arith.select %66, %76, %74 : vector<8x128xi1>, vector<8x128xf32>
      %78 = vector.shape_cast %64 : vector<1x1xf32> to vector<1x1xf32>
      %79 = vector.broadcast %78 : vector<1x1xf32> to vector<8x128xf32>
      %80 = arith.select %63, %79, %77 : vector<8x128xi1>, vector<8x128xf32>
      %c0_49 = arith.constant 0 : index
      %c0_50 = arith.constant 0 : index
      %c0_51 = arith.constant 0 : index
      %81 = vector.load %arg8[%c0_49, %c0_50, %c0_51] : memref<1x8x128xf32, #tpu.memory_space<vmem>>, vector<1x8x128xf32>
      %82 = vector.shape_cast %81 : vector<1x8x128xf32> to vector<8x128xf32>
      %83 = vector.shape_cast %80 : vector<8x128xf32> to vector<1x8x128xf32>
      tpu.vector_store %arg8[%c0_49, %c0_50, %c0_51], %83 {strides = array<i32>} : memref<1x8x128xf32, #tpu.memory_space<vmem>>, vector<1x8x128xf32>,
    } else {
    }
    return
  }
  func.func @transform_0(%arg0: i32, %arg1: i32, %arg2: i32) -> (i32, i32, i32) {
    %c1_i32 = arith.constant 1 : i32
    %0 = arith.muli %arg1, %c1_i32 : i32
    %1 = arith.addi %0, %arg2 : i32
    %c0_i32 = arith.constant 0 : i32
    %c0_i32_0 = arith.constant 0 : i32
    return %arg0, %c0_i32, %1 : i32, i32, i32
  }
  func.func @transform_1(%arg0: i32, %arg1: i32, %arg2: i32) -> (i32, i32, i32) {
    %c1_i32 = arith.constant 1 : i32
    %0 = arith.muli %arg1, %c1_i32 : i32
    %1 = arith.addi %0, %arg2 : i32
    %c0_i32 = arith.constant 0 : i32
    %c0_i32_0 = arith.constant 0 : i32
    return %arg0, %c0_i32, %1 : i32, i32, i32
  }
  func.func @transform_2(%arg0: i32, %arg1: i32, %arg2: i32) -> (i32, i32) {
    %c0_i32 = arith.constant 0 : i32
    %c0_i32_0 = arith.constant 0 : i32
    %c0_i32_1 = arith.constant 0 : i32
    return %c0_i32, %c0_i32_0 : i32, i32
  }
  func.func @transform_3(%arg0: i32, %arg1: i32, %arg2: i32) -> (i32, i32) {
    %c0_i32 = arith.constant 0 : i32
    %c0_i32_0 = arith.constant 0 : i32
    %c0_i32_1 = arith.constant 0 : i32
    return %c0_i32, %c0_i32_0 : i32, i32
  }
  func.func @transform_4(%arg0: i32, %arg1: i32, %arg2: i32) -> (i32, i32) {
    %c0_i32 = arith.constant 0 : i32
    %c0_i32_0 = arith.constant 0 : i32
    %c0_i32_1 = arith.constant 0 : i32
    return %c0_i32, %c0_i32_0 : i32, i32
  }
  func.func @transform_5(%arg0: i32, %arg1: i32, %arg2: i32) -> (i32, i32, i32) {
    %c1_i32 = arith.constant 1 : i32
    %0 = arith.muli %arg0, %c1_i32 : i32
    %1 = arith.addi %0, %arg1 : i32
    %c0_i32 = arith.constant 0 : i32
    %c0_i32_0 = arith.constant 0 : i32
    %c0_i32_1 = arith.constant 0 : i32
    return %1, %c0_i32, %c0_i32_0 : i32, i32, i32
  }
}

</mosaic_0001>

<llo_original>
// kernel: tpu_custom_call.1
$region0: #{tpu_custom_call.1}
  #allocation0 [shape = 'u32[]', space=smem, size = 0x4, offset = 0x4, fixed_abs, tag = 'smem constant byte address 0x4 - core index']
  #allocation1 [shape = 'u32[72,128]{1,0:T(1,128)}', space=vmem, size = 0x9000, scoped, tag = 'internal scratch']
  #allocation2 [shape = 'f32[1,1]{1,0:T(1,128)}', space=vmem, size = 0x200, scoped, tag = 'scratch operand']
  #allocation3 [shape = 'f32[1,1]{1,0:T(1,128)}', space=vmem, size = 0x200, scoped, tag = 'scratch operand']
  #allocation4 [shape = 'f32[1,1]{1,0:T(1,128)}', space=vmem, size = 0x200, scoped, tag = 'scratch operand']
  %s0 = inlined_call_operand.vmem [shape: f32[2,6,256], index: 0, kind: input, shape index: {}]
  %s1 = inlined_call_operand.vmem [shape: f32[2,6,256], index: 1, kind: input, shape index: {}]
  %s2 = inlined_call_operand.vmem [shape: f32[32,6], index: 2, kind: input, shape index: {}]
  %s3 = inlined_call_operand.vmem [shape: f32[6,6], index: 3, kind: input, shape index: {}]
  %s4 = inlined_call_operand.vmem [shape: f32[8,32], index: 4, kind: input, shape index: {}]
  %s5 = inlined_call_operand.hbm [shape: f32[2,8,128], index: 5, kind: output, shape index: {}]
  %s6 = sld [smem:[#allocation0]]
  $region61: #{tpu_custom_call.1} parent=0
    _
  %s8 = ssub.s32 1, %s6
  %s9 = scalar_select 0, %s8, %s6
  $region1: #{tpu_custom_call.1} parent=0
    #allocation5 [shape = 'u8[8192]{0}', space=vmem, size = 0x2000, scoped, tag = 'output window, operand 0']
    #allocation6 [shape = 's32[2]{0}', space=sflag, size = 0x8, scoped, tag = 'scoped memory for tpu_custom_call.1']
    %10 = vsyncpa [#allocation6], 0
    %s11 = scalar_lea.sflag [#allocation6], 1
    %12 = vsyncpa %s11, 0
    loop: start=0, step=1, limit=4
    $region2: #{tpu_custom_call.1} parent=1 // loop_pre_header
      _
    $region3: #{tpu_custom_call.1} parent=1 // loop_header
      %s14 = sphi 0, %s18
      %p15 = scmp.ge.s32.totalorder %s14, 4
      %s21 = sphi 0, %s40
      %s22 = sphi 0, %s36
      %s23 = sphi 0, %s32
      %s24 = sphi 0, %s21
      %s25 = sphi 0, %s22
      %s26 = sphi 0, %s23
      %s27 = sphi 0, %s24
      %s28 = sphi 0, %s25
      %s29 = sphi 0, %s26
      %s47 = sphi 0, %s49
      %s50 = sphi 0, %s47
      %s51 = sphi 0, %s50
      %s67 = sphi 0, %s51
      %s77 = sphi 0, %s79
      %s80 = sphi 0, %s77
      %s81 = sphi 0, %s80
      %s97 = sphi 0, %s81
      %s101 = sphi 0, %s101
      %s103 = sphi 0, %s101
      %s104 = sphi 0, %s103
      %s118 = sphi 0, %s104
      %s122 = sphi 0, %s122
      %s124 = sphi 0, %s122
      %s125 = sphi 0, %s124
      %s139 = sphi 0, %s125
      %s143 = sphi 0, %s143
      %s145 = sphi 0, %s143
      %s146 = sphi 0, %s145
      %s160 = sphi 0, %s146
      %s168 = sphi 0, %s170
      %s171 = sphi 0, %s168
      %s172 = sphi 0, %s171
      %s188 = sphi 0, %s172
    $region4: #{tpu_custom_call.1} parent=1 // loop_header_branch
      %17 = sbr.rel (%p15) target = $region8
    $region5: #{tpu_custom_call.1} parent=1 // loop_body
      %s19 = ssub.s32 %s14, 1
      %s20 = ssub.s32 %s14, 2
      %s30 = sadd.s32 1, %s23
      %p31 = scmp.ge.s32.totalorder %s30, 1
      %s32 = scalar_select %p31, 0, %s30
      %s33 = sadd.s32 1, %s22
      %s34 = scalar_select %p31, %s33, %s22
      %p35 = scmp.ge.s32.totalorder %s34, 1
      %s36 = scalar_select %p35, 0, %s34
      %s37 = sadd.s32 1, %s21
      %s38 = scalar_select %p35, %s37, %s21
      %p39 = scmp.ge.s32.totalorder %s38, 2
      %s40 = scalar_select %p39, 0, %s38
      %s41 = sadd.s32 %s22, %s23
      %s42 = sadd.s32 %s36, %s32
      %s43 = ssub.s32 %s21, %s40
      %s44 = ssub.s32 %s41, %s42
      %s45 = sor.u32 %s43, %s44
      %p46 = scmp.eq.s32.totalorder %s45, 0
      %s48 = sadd.s32 %s47, 1
      %s49 = scalar_select %p46, %s47, %s48
      %p52 = pneg %p46
      %p53 = scmp.eq.s32.totalorder %s14, 1
      %p54 = por %p52, %p53
      %p55 = scmp.ne.s32.totalorder %s47, %s50
      %p56 = scmp.eq.s32.totalorder %s14, 0
      %p57 = por %p55, %p56
      %p58 = scmp.ne.s32.totalorder %s47, %s50
      %p59 = scmp.eq.s32.totalorder %s19, 1
      %p60 = por %p58, %p59
      %p61 = scmp.ne.s32.totalorder %s50, %s51
      %p62 = scmp.eq.s32.totalorder %s19, 0
      %p63 = por %p61, %p62
      %p64 = scmp.ne.s32.totalorder %s50, %s51
      %p65 = scmp.eq.s32.totalorder %s20, 1
      %p66 = por %p64, %p65
      %p68 = scmp.ne.s32.totalorder %s51, %s67
      %p69 = scmp.eq.s32.totalorder %s20, 0
      %p70 = por %p68, %p69
      %s71 = sadd.s32 %s22, %s23
      %s72 = sadd.s32 %s36, %s32
      %s73 = ssub.s32 %s21, %s40
      %s74 = ssub.s32 %s71, %s72
      %s75 = sor.u32 %s73, %s74
      %p76 = scmp.eq.s32.totalorder %s75, 0
      %s78 = sadd.s32 %s77, 1
      %s79 = scalar_select %p76, %s77, %s78
      %p82 = pneg %p76
      %p83 = scmp.eq.s32.totalorder %s14, 1
      %p84 = por %p82, %p83
      %p85 = scmp.ne.s32.totalorder %s77, %s80
      %p86 = scmp.eq.s32.totalorder %s14, 0
      %p87 = por %p85, %p86
      %p88 = scmp.ne.s32.totalorder %s77, %s80
      %p89 = scmp.eq.s32.totalorder %s19, 1
      %p90 = por %p88, %p89
      %p91 = scmp.ne.s32.totalorder %s80, %s81
      %p92 = scmp.eq.s32.totalorder %s19, 0
      %p93 = por %p91, %p92
      %p94 = scmp.ne.s32.totalorder %s80, %s81
      %p95 = scmp.eq.s32.totalorder %s20, 1
      %p96 = por %p94, %p95
      %p98 = scmp.ne.s32.totalorder %s81, %s97
      %p99 = scmp.eq.s32.totalorder %s20, 0
      %p100 = por %p98, %p99
      %s102 = sadd.s32 %s101, 1
      %p105 = scmp.eq.s32.totalorder %s14, 1
      %p106 = scmp.ne.s32.totalorder %s101, %s103
      %p107 = scmp.eq.s32.totalorder %s14, 0
      %p108 = por %p106, %p107
      %p109 = scmp.ne.s32.totalorder %s101, %s103
      %p110 = scmp.eq.s32.totalorder %s19, 1
      %p111 = por %p109, %p110
      %p112 = scmp.ne.s32.totalorder %s103, %s104
      %p113 = scmp.eq.s32.totalorder %s19, 0
      %p114 = por %p112, %p113
      %p115 = scmp.ne.s32.totalorder %s103, %s104
      %p116 = scmp.eq.s32.totalorder %s20, 1
      %p117 = por %p115, %p116
      %p119 = scmp.ne.s32.totalorder %s104, %s118
      %p120 = scmp.eq.s32.totalorder %s20, 0
      %p121 = por %p119, %p120
      %s123 = sadd.s32 %s122, 1
      %p126 = scmp.eq.s32.totalorder %s14, 1
      %p127 = scmp.ne.s32.totalorder %s122, %s124
      %p128 = scmp.eq.s32.totalorder %s14, 0
      %p129 = por %p127, %p128
      %p130 = scmp.ne.s32.totalorder %s122, %s124
      %p131 = scmp.eq.s32.totalorder %s19, 1
      %p132 = por %p130, %p131
      %p133 = scmp.ne.s32.totalorder %s124, %s125
      %p134 = scmp.eq.s32.totalorder %s19, 0
      %p135 = por %p133, %p134
      %p136 = scmp.ne.s32.totalorder %s124, %s125
      %p137 = scmp.eq.s32.totalorder %s20, 1
      %p138 = por %p136, %p137
      %p140 = scmp.ne.s32.totalorder %s125, %s139
      %p141 = scmp.eq.s32.totalorder %s20, 0
      %p142 = por %p140, %p141
      %s144 = sadd.s32 %s143, 1
      %p147 = scmp.eq.s32.totalorder %s14, 1
      %p148 = scmp.ne.s32.totalorder %s143, %s145
      %p149 = scmp.eq.s32.totalorder %s14, 0
      %p150 = por %p148, %p149
      %p151 = scmp.ne.s32.totalorder %s143, %s145
      %p152 = scmp.eq.s32.totalorder %s19, 1
      %p153 = por %p151, %p152
      %p154 = scmp.ne.s32.totalorder %s145, %s146
      %p155 = scmp.eq.s32.totalorder %s19, 0
      %p156 = por %p154, %p155
      %p157 = scmp.ne.s32.totalorder %s145, %s146
      %p158 = scmp.eq.s32.totalorder %s20, 1
      %p159 = por %p157, %p158
      %p161 = scmp.ne.s32.totalorder %s146, %s160
      %p162 = scmp.eq.s32.totalorder %s20, 0
      %p163 = por %p161, %p162
      %s164 = sadd.s32 %s21, %s22
      %s165 = sadd.s32 %s40, %s36
      %s166 = ssub.s32 %s164, %s165
      %p167 = scmp.eq.s32.totalorder %s166, 0
      %s169 = sadd.s32 %s168, 1
      %s170 = scalar_select %p167, %s168, %s169
      %p173 = pneg %p167
      %p174 = scmp.eq.s32.totalorder %s14, 1
      %p175 = por %p173, %p174
      %p176 = scmp.ne.s32.totalorder %s168, %s171
      %p177 = scmp.eq.s32.totalorder %s14, 0
      %p178 = por %p176, %p177
      %p179 = scmp.ne.s32.totalorder %s168, %s171
      %p180 = scmp.eq.s32.totalorder %s19, 1
      %p181 = por %p179, %p180
      %p182 = scmp.ne.s32.totalorder %s171, %s172
      %p183 = scmp.eq.s32.totalorder %s19, 0
      %p184 = por %p182, %p183
      %p185 = scmp.ne.s32.totalorder %s171, %s172
      %p186 = scmp.eq.s32.totalorder %s20, 1
      %p187 = por %p185, %p186
      %p189 = scmp.ne.s32.totalorder %s172, %s188
      %p190 = scmp.eq.s32.totalorder %s20, 0
      %p191 = por %p189, %p190
      %p192 = scmp.le.s32.totalorder 1, %s14
      %p193 = scmp.lt.s32.totalorder %s14, 3
      %p194 = pnand %p192, %p193
      %p195 = pneg %p194
      // Predicated region
      $region9: #{tpu_custom_call.1} parent=5 // pred_check
        _
      $region10: #{tpu_custom_call.1} parent=5 // pred_check_branch
        %197 = sbr.rel (%p194) target = $region12
      $region11: #{tpu_custom_call.1} parent=5 // pred_region
        %s198 = ssub.s32 %s14, 1
        // Predicated region
        $region13: #{tpu_custom_call.1} parent=11 // pred_check
          %p199 = pneg %p114
        $region14: #{tpu_custom_call.1} parent=11 // pred_check_branch
          %201 = sbr.rel (%p199) target = $region16
        $region15: #{tpu_custom_call.1} parent=11 // pred_region
          _
        $region16: #{tpu_custom_call.1} parent=11 // pred_fallthru
          _
        // Predicated region
        $region17: #{tpu_custom_call.1} parent=11 // pred_check
          %p202 = pneg %p135
        $region18: #{tpu_custom_call.1} parent=11 // pred_check_branch
          %204 = sbr.rel (%p202) target = $region20
        $region19: #{tpu_custom_call.1} parent=11 // pred_region
          _
        $region20: #{tpu_custom_call.1} parent=11 // pred_fallthru
          _
        // Predicated region
        $region21: #{tpu_custom_call.1} parent=11 // pred_check
          %p205 = pneg %p156
        $region22: #{tpu_custom_call.1} parent=11 // pred_check_branch
          %207 = sbr.rel (%p205) target = $region24
        $region23: #{tpu_custom_call.1} parent=11 // pred_region
          _
        $region24: #{tpu_custom_call.1} parent=11 // pred_fallthru
          _
      $region12: #{tpu_custom_call.1} parent=5 // pred_fallthru
        _
      %p208 = scmp.lt.s32.totalorder %s14, 2
      // Predicated region
      $region25: #{tpu_custom_call.1} parent=5 // pred_check
        %p209 = pneg %p208
      $region26: #{tpu_custom_call.1} parent=5 // pred_check_branch
        %211 = sbr.rel (%p209) target = $region28
      $region27: #{tpu_custom_call.1} parent=5 // pred_region
        // Predicated region
        $region29: #{tpu_custom_call.1} parent=27 // pred_check
          %p212 = pneg %p57
        $region30: #{tpu_custom_call.1} parent=27 // pred_check_branch
          %214 = sbr.rel (%p212) target = $region32
        $region31: #{tpu_custom_call.1} parent=27 // pred_region
          %s215 = sadd.s32 %s22, %s23
          %s216 = smul.u32 2, %s215
          %p217 = scmp.lt.s32.totalorder %s21, 1
          %s218 = scalar_select %p217, %s21, 1
          %p219 = scmp.lt.s32.totalorder %s216, 1
          %s220 = scalar_select %p219, %s216, 1
          %s221 = smul.addr %s218, 2
          %s222 = sadd.s32 %s220, %s221
          %s223 = smul.addr %s222, 8
          %s224 = scalar_lea.vmem %s0, %s223
          %s225 = sadd.s32 %s22, %s23
          %s226 = smul.u32 2, %s225
        $region32: #{tpu_custom_call.1} parent=27 // pred_fallthru
          _
        // Predicated region
        $region33: #{tpu_custom_call.1} parent=27 // pred_check
          %p227 = pneg %p87
        $region34: #{tpu_custom_call.1} parent=27 // pred_check_branch
          %229 = sbr.rel (%p227) target = $region36
        $region35: #{tpu_custom_call.1} parent=27 // pred_region
          %s230 = sadd.s32 %s22, %s23
          %s231 = smul.u32 2, %s230
          %p232 = scmp.lt.s32.totalorder %s21, 1
          %s233 = scalar_select %p232, %s21, 1
          %p234 = scmp.lt.s32.totalorder %s231, 1
          %s235 = scalar_select %p234, %s231, 1
          %s236 = smul.addr %s233, 2
          %s237 = sadd.s32 %s235, %s236
          %s238 = smul.addr %s237, 8
          %s239 = scalar_lea.vmem %s1, %s238
          %s240 = sadd.s32 %s22, %s23
          %s241 = smul.u32 2, %s240
        $region36: #{tpu_custom_call.1} parent=27 // pred_fallthru
          _
      $region28: #{tpu_custom_call.1} parent=5 // pred_fallthru
        _
      %p242 = scmp.le.s32.totalorder 1, %s14
      %p243 = scmp.lt.s32.totalorder %s14, 3
      %p244 = pnand %p242, %p243
      %p245 = pneg %p244
      // Predicated region
      $region37: #{tpu_custom_call.1} parent=5 // pred_check
        _
      $region38: #{tpu_custom_call.1} parent=5 // pred_check_branch
        %247 = sbr.rel (%p244) target = $region40
      $region39: #{tpu_custom_call.1} parent=5 // pred_region
        %s248 = ssub.s32 %s14, 1
        %s249 = sadd.s32 %s25, %s26
        %s250 = smul.u32 2, %s249
        %p251 = scmp.lt.s32.totalorder %s24, 1
        %s252 = scalar_select %p251, %s24, 1
        %p253 = scmp.lt.s32.totalorder %s250, 1
        %s254 = scalar_select %p253, %s250, 1
        %s255 = smul.addr %s252, 2
        %s256 = sadd.s32 %s254, %s255
        %s257 = smul.addr %s256, 8
        %s258 = scalar_lea.vmem %s0, %s257
        %p259 = pneg %p63
        %p260 = pneg %p60
        %s261 = sadd.s32 %s25, %s26
        %s262 = smul.u32 2, %s261
        %p263 = scmp.lt.s32.totalorder %s24, 1
        %s264 = scalar_select %p263, %s24, 1
        %p265 = scmp.lt.s32.totalorder %s262, 1
        %s266 = scalar_select %p265, %s262, 1
        %s267 = smul.addr %s264, 2
        %s268 = sadd.s32 %s266, %s267
        %s269 = smul.addr %s268, 8
        %s270 = scalar_lea.vmem %s1, %s269
        %p271 = pneg %p93
        %p272 = pneg %p90
        %p273 = pneg %p114
        %p274 = pneg %p111
        %p275 = pneg %p135
        %p276 = pneg %p132
        %p277 = pneg %p156
        %p278 = pneg %p153
        %p279 = pneg %p184
        %p280 = pneg %p181
        %s281 = sand.u32 %s171, 1
        %s282 = scalar_lea.sflag [#allocation6], %s281
        %s283 = sand.u32 %s171, 1
        %s284 = smul.addr %s283, 8
        %s285 = scalar_lea.vmem [#allocation5], %s284
        %s286 = sadd.s32 %s25, %s26
        %s287 = smul.u32 2, %s286
        %p288 = scmp.lt.s32.totalorder %s24, 1
        %s289 = scalar_select %p288, %s24, 1
        %p290 = scmp.lt.s32.totalorder %s287, 1
        %s291 = scalar_select %p290, %s287, 1
        %s292 = smul.addr %s289, 2
        %s293 = sadd.s32 %s291, %s292
        %s294 = smul.addr %s293, 8
        %s295 = scalar_lea.vmem %s0, %s294
        %s296 = sadd.s32 %s25, %s26
        %s297 = smul.u32 2, %s296
        %s298 = sadd.s32 %s25, %s26
        %s299 = smul.u32 2, %s298
        %p300 = scmp.lt.s32.totalorder %s24, 1
        %s301 = scalar_select %p300, %s24, 1
        %p302 = scmp.lt.s32.totalorder %s299, 1
        %s303 = scalar_select %p302, %s299, 1
        %s304 = smul.addr %s301, 2
        %s305 = sadd.s32 %s303, %s304
        %s306 = smul.addr %s305, 8
        %s307 = scalar_lea.vmem %s1, %s306
        %s308 = sadd.s32 %s25, %s26
        %s309 = smul.u32 2, %s308
        %s310 = sadd.s32 %s24, %s25
        %p311 = scmp.eq.s32.totalorder %s26, 0
        // Predicated region
        $region41: #{tpu_custom_call.1} parent=39 // pred_check
          %p312 = pneg %p311
        $region42: #{tpu_custom_call.1} parent=39 // pred_check_branch
          %314 = sbr.rel (%p312) target = $region44
        $region43: #{tpu_custom_call.1} parent=39 // pred_region
          %vm315 = vcmask 0
          %316 = vst.msk [vmem:[#allocation2] sm:$0x1] %vm315, 0.0
          %317 = vst.msk [vmem:[#allocation3] sm:$0x1] %vm315, 0.0
          %318 = vst.msk [vmem:[#allocation4] sm:$0x1] %vm315, 0.0
        $region44: #{tpu_custom_call.1} parent=39 // pred_fallthru
          _
        %v319 = vld [vmem:[%s295] sm:$0x3f]
        %v320 = vld [vmem:[%s295 + $0x8] sm:$0x3f]
        %v321 = vld [vmem:[%s307] sm:$0x3f]
        %v322 = vld [vmem:[%s307 + $0x8] sm:$0x3f]
        %v323 = vmul.f32 %v319, 0.5
        %v324 = vmul.f32 %v320, 0.5
        %v325 = vadd.f32 %v323, 0.5
        %v326 = vadd.f32 %v324, 0.5
        %v327 = vmul.f32 %v321, 0.5
        %v328 = vmul.f32 %v322, 0.5
        %v329 = vadd.f32 %v327, 0.5
        %v330 = vadd.f32 %v328, 0.5
        %v331 = vsub.f32 %v325, %v329
        %v332 = vsub.f32 %v326, %v330
        %v333 = vld [vmem:[#allocation2] sm:$0x1]
        %v334 = vand.u32 2147483647, %v331
        %v335 = vand.u32 2147483647, %v332
        %vm336 = vcmask 1045504
        %v337 = vsel %vm336, %v334, 0.0
        %v338 = vsel %vm336, %v335, 0.0
        %v339 = vadd.f32 %v337, %v338
        %340 = vadd.xlane.f32.xlu0 %v339
        %v341 = vpop.xlane.xlu0 %340
        %v342 = vrot.slane %v341, 4
        %v343 = vadd.f32 %v341, %v342
        %v344 = vrot.slane %v343, 2
        %v345 = vadd.f32 %v343, %v344
        %v346 = vrot.slane %v345, 1
        %v347 = vadd.f32 %v345, %v346
        %s348 = vtos %v347
        %v349 = vstv %s348
        %v350 = vadd.f32 %v333, %v349
        %vm351 = vcmask 0
        %352 = vst.msk [vmem:[#allocation2] sm:$0x1] %vm351, %v350
        %v353 = vld [vmem:[%s3] sm:$0x3f]
        %vm354 = vcmask 48128
        %v356 = vsel %vm354, %v353, 0
        %v359 = vsel %vm336, %v331, 0
        %v362 = vsel %vm336, %v332, 0
        %364 = vmatpush.msra.mxu0 0.0
        %365 = vmatpush.msra.mxu0 0.0
        %366 = vmatpush.msra.mxu0 0.0
        %367 = vmatpush.msra.mxu0 0.0
        %368 = vmatpush.msra.mxu0 0.0
        %369 = vmatpush.msra.mxu0 0.0
        %370 = vmatpush.msra.mxu0 0.0
        %371 = vmatpush.msra.mxu0 0.0
        %372 = vmatpush.msra.mxu0 0.0
        %373 = vmatpush.msra.mxu0 0.0
        %374 = vmatpush.msra.mxu0 0.0
        %375 = vmatpush.msra.mxu0 0.0
        %376 = vmatpush.msra.mxu0 0.0
        %377 = vmatpush.msra.mxu0 0.0
        %378 = vmatpush.msra.mxu0 0.0
        %379 = vmatpush.msra.mxu0 %v359
        %380 = vmatmul.f32.gmra.mxu0 %v356
        %v381 = vpop.f32.mrf.mxu0
        %v382 = vadd.f32 0.0, %v381
        %383 = vdwg.mxu0
        %384 = vmatpush.msra.mxu0 0.0
        %385 = vmatpush.msra.mxu0 0.0
        %386 = vmatpush.msra.mxu0 0.0
        %387 = vmatpush.msra.mxu0 0.0
        %388 = vmatpush.msra.mxu0 0.0
        %389 = vmatpush.msra.mxu0 0.0
        %390 = vmatpush.msra.mxu0 0.0
        %391 = vmatpush.msra.mxu0 0.0
        %392 = vmatpush.msra.mxu0 0.0
        %393 = vmatpush.msra.mxu0 0.0
        %394 = vmatpush.msra.mxu0 0.0
        %395 = vmatpush.msra.mxu0 0.0
        %396 = vmatpush.msra.mxu0 0.0
        %397 = vmatpush.msra.mxu0 0.0
        %398 = vmatpush.msra.mxu0 0.0
        %399 = vmatpush.msra.mxu0 %v362
        %400 = vmatmul.f32.gmra.mxu0 %v356
        %v401 = vpop.f32.mrf.mxu0
        %v402 = vadd.f32 0.0, %v401
        %403 = vdwg.mxu0
        %v404 = vld [vmem:[#allocation4] sm:$0x1]
        %v405 = vand.u32 2147483647, %v382
        %v406 = vand.u32 2147483647, %v402
        %v407 = vsel %vm336, %v405, 0.0
        %v408 = vsel %vm336, %v406, 0.0
        %v409 = vadd.f32 %v407, %v408
        %410 = vadd.xlane.f32.xlu0 %v409
        %v411 = vpop.xlane.xlu0 %410
        %v412 = vrot.slane %v411, 4
        %v413 = vadd.f32 %v411, %v412
        %v414 = vrot.slane %v413, 2
        %v415 = vadd.f32 %v413, %v414
        %v416 = vrot.slane %v415, 1
        %v417 = vadd.f32 %v415, %v416
        %s418 = vtos %v417
        %v419 = vstv %s418
        %v420 = vadd.f32 %v404, %v419
        %421 = vst.msk [vmem:[#allocation4] sm:$0x1] %vm351, %v420
        %v422 = vld [vmem:[%s2] sm:$0xff]
        %v423 = vld [vmem:[%s2 + $0x8] sm:$0xff]
        %v424 = vld [vmem:[%s2 + $0x10] sm:$0xff]
        %v425 = vld [vmem:[%s2 + $0x18] sm:$0xff]
        %v427 = vsel %vm354, %v422, 0
        %v430 = vsel %vm354, %v423, 0
        %v433 = vsel %vm354, %v424, 0
        %v436 = vsel %vm354, %v425, 0
        %v439 = vsel %vm336, %v325, 0
        %v442 = vsel %vm336, %v326, 0
        %444 = vmatpush.msra.mxu0 0.0
        %445 = vmatpush.msra.mxu0 0.0
        %446 = vmatpush.msra.mxu0 0.0
        %447 = vmatpush.msra.mxu0 0.0
        %448 = vmatpush.msra.mxu0 0.0
        %449 = vmatpush.msra.mxu0 0.0
        %450 = vmatpush.msra.mxu0 0.0
        %451 = vmatpush.msra.mxu0 0.0
        %452 = vmatpush.msra.mxu0 0.0
        %453 = vmatpush.msra.mxu0 0.0
        %454 = vmatpush.msra.mxu0 0.0
        %455 = vmatpush.msra.mxu0 0.0
        %456 = vmatpush.msra.mxu0 0.0
        %457 = vmatpush.msra.mxu0 0.0
        %458 = vmatpush.msra.mxu0 0.0
        %459 = vmatpush.msra.mxu0 %v439
        %460 = vmatmul.f32.gmra.mxu0 %v427
        %v461 = vpop.f32.mrf.mxu0
        %v462 = vadd.f32 0.0, %v461
        %463 = vmatmul.f32.gmra.mxu0 %v430
        %v464 = vpop.f32.mrf.mxu0
        %v465 = vadd.f32 0.0, %v464
        %466 = vmatmul.f32.gmra.mxu0 %v433
        %v467 = vpop.f32.mrf.mxu0
        %v468 = vadd.f32 0.0, %v467
        %469 = vmatmul.f32.gmra.mxu0 %v436
        %v470 = vpop.f32.mrf.mxu0
        %v471 = vadd.f32 0.0, %v470
        %472 = vdwg.mxu0
        %473 = vmatpush.msra.mxu0 0.0
        %474 = vmatpush.msra.mxu0 0.0
        %475 = vmatpush.msra.mxu0 0.0
        %476 = vmatpush.msra.mxu0 0.0
        %477 = vmatpush.msra.mxu0 0.0
        %478 = vmatpush.msra.mxu0 0.0
        %479 = vmatpush.msra.mxu0 0.0
        %480 = vmatpush.msra.mxu0 0.0
        %481 = vmatpush.msra.mxu0 0.0
        %482 = vmatpush.msra.mxu0 0.0
        %483 = vmatpush.msra.mxu0 0.0
        %484 = vmatpush.msra.mxu0 0.0
        %485 = vmatpush.msra.mxu0 0.0
        %486 = vmatpush.msra.mxu0 0.0
        %487 = vmatpush.msra.mxu0 0.0
        %488 = vmatpush.msra.mxu0 %v442
        %489 = vmatmul.f32.gmra.mxu0 %v427
        %v490 = vpop.f32.mrf.mxu0
        %v491 = vadd.f32 0.0, %v490
        %492 = vmatmul.f32.gmra.mxu0 %v430
        %v493 = vpop.f32.mrf.mxu0
        %v494 = vadd.f32 0.0, %v493
        %495 = vmatmul.f32.gmra.mxu0 %v433
        %v496 = vpop.f32.mrf.mxu0
        %v497 = vadd.f32 0.0, %v496
        %498 = vmatmul.f32.gmra.mxu0 %v436
        %v499 = vpop.f32.mrf.mxu0
        %v500 = vadd.f32 0.0, %v499
        %501 = vdwg.mxu0
        %v502 = vmax.f32 %v462, 0.0
        %v503 = vmax.f32 %v491, 0.0
        %v504 = vmax.f32 %v465, 0.0
        %v505 = vmax.f32 %v494, 0.0
        %v506 = vmax.f32 %v468, 0.0
        %v507 = vmax.f32 %v497, 0.0
        %v508 = vmax.f32 %v471, 0.0
        %v509 = vmax.f32 %v500, 0.0
        %v511 = vsel %vm336, %v329, 0
        %v514 = vsel %vm336, %v330, 0
        %516 = vmatpush.msra.mxu0 0.0
        %517 = vmatpush.msra.mxu0 0.0
        %518 = vmatpush.msra.mxu0 0.0
        %519 = vmatpush.msra.mxu0 0.0
        %520 = vmatpush.msra.mxu0 0.0
        %521 = vmatpush.msra.mxu0 0.0
        %522 = vmatpush.msra.mxu0 0.0
        %523 = vmatpush.msra.mxu0 0.0
        %524 = vmatpush.msra.mxu0 0.0
        %525 = vmatpush.msra.mxu0 0.0
        %526 = vmatpush.msra.mxu0 0.0
        %527 = vmatpush.msra.mxu0 0.0
        %528 = vmatpush.msra.mxu0 0.0
        %529 = vmatpush.msra.mxu0 0.0
        %530 = vmatpush.msra.mxu0 0.0
        %531 = vmatpush.msra.mxu0 %v511
        %532 = vmatmul.f32.gmra.mxu0 %v427
        %v533 = vpop.f32.mrf.mxu0
        %v534 = vadd.f32 0.0, %v533
        %535 = vmatmul.f32.gmra.mxu0 %v430
        %v536 = vpop.f32.mrf.mxu0
        %v537 = vadd.f32 0.0, %v536
        %538 = vmatmul.f32.gmra.mxu0 %v433
        %v539 = vpop.f32.mrf.mxu0
        %v540 = vadd.f32 0.0, %v539
        %541 = vmatmul.f32.gmra.mxu0 %v436
        %v542 = vpop.f32.mrf.mxu0
        %v543 = vadd.f32 0.0, %v542
        %544 = vdwg.mxu0
        %545 = vmatpush.msra.mxu0 0.0
        %546 = vmatpush.msra.mxu0 0.0
        %547 = vmatpush.msra.mxu0 0.0
        %548 = vmatpush.msra.mxu0 0.0
        %549 = vmatpush.msra.mxu0 0.0
        %550 = vmatpush.msra.mxu0 0.0
        %551 = vmatpush.msra.mxu0 0.0
        %552 = vmatpush.msra.mxu0 0.0
        %553 = vmatpush.msra.mxu0 0.0
        %554 = vmatpush.msra.mxu0 0.0
        %555 = vmatpush.msra.mxu0 0.0
        %556 = vmatpush.msra.mxu0 0.0
        %557 = vmatpush.msra.mxu0 0.0
        %558 = vmatpush.msra.mxu0 0.0
        %559 = vmatpush.msra.mxu0 0.0
        %560 = vmatpush.msra.mxu0 %v514
        %561 = vmatmul.f32.gmra.mxu0 %v427
        %v562 = vpop.f32.mrf.mxu0
        %v563 = vadd.f32 0.0, %v562
        %564 = vmatmul.f32.gmra.mxu0 %v430
        %v565 = vpop.f32.mrf.mxu0
        %v566 = vadd.f32 0.0, %v565
        %567 = vmatmul.f32.gmra.mxu0 %v433
        %v568 = vpop.f32.mrf.mxu0
        %v569 = vadd.f32 0.0, %v568
        %570 = vmatmul.f32.gmra.mxu0 %v436
        %v571 = vpop.f32.mrf.mxu0
        %v572 = vadd.f32 0.0, %v571
        %573 = vdwg.mxu0
        %v574 = vmax.f32 %v534, 0.0
        %v575 = vmax.f32 %v563, 0.0
        %v576 = vmax.f32 %v537, 0.0
        %v577 = vmax.f32 %v566, 0.0
        %v578 = vmax.f32 %v540, 0.0
        %v579 = vmax.f32 %v569, 0.0
        %v580 = vmax.f32 %v543, 0.0
        %v581 = vmax.f32 %v572, 0.0
        %v582 = vsub.f32 %v502, %v574
        %v583 = vsub.f32 %v503, %v575
        %v584 = vsub.f32 %v504, %v576
        %v585 = vsub.f32 %v505, %v577
        %v586 = vsub.f32 %v506, %v578
        %v587 = vsub.f32 %v507, %v579
        %v588 = vsub.f32 %v508, %v580
        %v589 = vsub.f32 %v509, %v581
        %v590 = vand.u32 2147483647, %v582
        %v591 = vand.u32 2147483647, %v583
        %v592 = vand.u32 2147483647, %v584
        %v593 = vand.u32 2147483647, %v585
        %v594 = vand.u32 2147483647, %v586
        %v595 = vand.u32 2147483647, %v587
        %v596 = vand.u32 2147483647, %v588
        %v597 = vand.u32 2147483647, %v589
        %v598 = vld [vmem:[%s4] sm:$0xff]
        %vm599 = vcmask 261120
        %v601 = vsel %vm599, %v598, 0
        %603 = vmatpush.msra.mxu0 0.0
        %604 = vmatpush.msra.mxu0 0.0
        %605 = vmatpush.msra.mxu0 0.0
        %606 = vmatpush.msra.mxu0 0.0
        %607 = vmatpush.msra.mxu0 0.0
        %608 = vmatpush.msra.mxu0 0.0
        %609 = vmatpush.msra.mxu0 0.0
        %610 = vmatpush.msra.mxu0 0.0
        %611 = vmatpush.msra.mxu0 0.0
        %612 = vmatpush.msra.mxu0 0.0
        %613 = vmatpush.msra.mxu0 0.0
        %614 = vmatpush.msra.mxu0 0.0
        %615 = vmatpush.msra.mxu0 %v596
        %616 = vmatpush.msra.mxu0 %v594
        %617 = vmatpush.msra.mxu0 %v592
        %618 = vmatpush.msra.mxu0 %v590
        %619 = vmatmul.f32.gmra.mxu0 %v601
        %v620 = vpop.f32.mrf.mxu0
        %v621 = vadd.f32 0.0, %v620
        %622 = vdwg.mxu0
        %623 = vmatpush.msra.mxu0 0.0
        %624 = vmatpush.msra.mxu0 0.0
        %625 = vmatpush.msra.mxu0 0.0
        %626 = vmatpush.msra.mxu0 0.0
        %627 = vmatpush.msra.mxu0 0.0
        %628 = vmatpush.msra.mxu0 0.0
        %629 = vmatpush.msra.mxu0 0.0
        %630 = vmatpush.msra.mxu0 0.0
        %631 = vmatpush.msra.mxu0 0.0
        %632 = vmatpush.msra.mxu0 0.0
        %633 = vmatpush.msra.mxu0 0.0
        %634 = vmatpush.msra.mxu0 0.0
        %635 = vmatpush.msra.mxu0 %v597
        %636 = vmatpush.msra.mxu0 %v595
        %637 = vmatpush.msra.mxu0 %v593
        %638 = vmatpush.msra.mxu0 %v591
        %639 = vmatmul.f32.gmra.mxu0 %v601
        %v640 = vpop.f32.mrf.mxu0
        %v641 = vadd.f32 0.0, %v640
        %642 = vdwg.mxu0
        %v643 = vadd.f32 %v621, %v641
        %644 = vadd.xlane.f32.xlu0 %v643
        %v645 = vpop.xlane.xlu0 %644
        %v646 = vrot.slane %v645, 4
        %v647 = vadd.f32 %v645, %v646
        %v648 = vrot.slane %v647, 2
        %v649 = vadd.f32 %v647, %v648
        %v650 = vrot.slane %v649, 1
        %v651 = vadd.f32 %v649, %v650
        %s652 = vtos %v651
        %v653 = vstv %s652
        %v654 = vadd.f32 %v653, 0.0
        %v655 = vld [vmem:[#allocation3] sm:$0x1]
        %v656 = vadd.f32 %v655, %v654
        %657 = vst.msk [vmem:[#allocation3] sm:$0x1] %vm351, %v656
        // Predicated region
        $region45: #{tpu_custom_call.1} parent=39 // pred_check
          %p658 = pneg %p311
        $region46: #{tpu_custom_call.1} parent=39 // pred_check_branch
          %660 = sbr.rel (%p658) target = $region48
        $region47: #{tpu_custom_call.1} parent=39 // pred_region
          %v661 = vlaneseq
          %v662 = vshrl.u32 %v661, 7
          %vm663 = vcmp.eq.s32.totalorder %v662, 0
          %v664 = vld [vmem:[#allocation2] sm:$0x1]
          %vm665 = vcmp.eq.s32.totalorder %v662, 1
          %v666 = vld [vmem:[#allocation3] sm:$0x1]
          %vm667 = vcmp.eq.s32.totalorder %v662, 2
          %v668 = vld [vmem:[#allocation4] sm:$0x1]
          %v670 = vperm.slane %v668, 0
          %671 = vset.pattern.permute.xlu0 0
          %672 = vperm.xlu0 %671, %v670
          %v673 = vpop.permute.xlu0 %672
          %v675 = vsel %vm667, %v673, 0.0
          %v677 = vperm.slane %v666, 0
          %678 = vset.pattern.permute.xlu0 0
          %679 = vperm.xlu0 %678, %v677
          %v680 = vpop.permute.xlu0 %679
          %v682 = vsel %vm665, %v680, %v675
          %v684 = vperm.slane %v664, 0
          %685 = vset.pattern.permute.xlu0 0
          %686 = vperm.xlu0 %685, %v684
          %v687 = vpop.permute.xlu0 %686
          %v689 = vsel %vm663, %v687, %v682
          %690 = vst [vmem:[%s285] sm:$0xff] %v689
        $region48: #{tpu_custom_call.1} parent=39 // pred_fallthru
          _
        %s691 = sand.u32 %s171, 1
        %s692 = scalar_lea.sflag [#allocation6], %s691
        %s693 = sand.u32 %s171, 1
        %s694 = smul.addr %s693, 8
        %s695 = scalar_lea.vmem [#allocation5], %s694
        // Predicated region
        $region49: #{tpu_custom_call.1} parent=39 // pred_check
          %p696 = pneg %p181
        $region50: #{tpu_custom_call.1} parent=39 // pred_check_branch
          %698 = sbr.rel (%p696) target = $region52
        $region51: #{tpu_custom_call.1} parent=39 // pred_region
          %s699 = sadd.s32 %s24, %s25
          %701 = vsyncadd %s692, 0
          %s702 = smul.addr %s699, 8
          %s703 = scalar_lea.hbm %s5, %s702
          %s705 = sshll.u32 %s695, 4
          %s706 = int_to_ptr.vmem [resolvable:$true] %s705
          %s707 = sshll.u32 %s703, 4
          %s708 = int_to_ptr.hbm [resolvable:$true] %s707
          %710 = dma.vmem_to_hbm [thread:$0]  %s706, 128, %s708, %s692
        $region52: #{tpu_custom_call.1} parent=39 // pred_fallthru
          _
      $region40: #{tpu_custom_call.1} parent=5 // pred_fallthru
        _
      %p711 = scmp.le.s32.totalorder 2, %s14
      // Predicated region
      $region53: #{tpu_custom_call.1} parent=5 // pred_check
        %p712 = pneg %p711
      $region54: #{tpu_custom_call.1} parent=5 // pred_check_branch
        %714 = sbr.rel (%p712) target = $region56
      $region55: #{tpu_custom_call.1} parent=5 // pred_region
        %s715 = ssub.s32 %s14, 2
        // Predicated region
        $region57: #{tpu_custom_call.1} parent=55 // pred_check
          %p716 = pneg %p187
        $region58: #{tpu_custom_call.1} parent=55 // pred_check_branch
          %718 = sbr.rel (%p716) target = $region60
        $region59: #{tpu_custom_call.1} parent=55 // pred_region
          %s719 = sand.u32 %s172, 1
          %s720 = scalar_lea.sflag [#allocation6], %s719
          %s721 = sand.u32 %s172, 1
          %s722 = smul.addr %s721, 8
          %s723 = scalar_lea.vmem [#allocation5], %s722
          %725 = dma.done %s720, 128
        $region60: #{tpu_custom_call.1} parent=55 // pred_fallthru
          _
      $region56: #{tpu_custom_call.1} parent=5 // pred_fallthru
        _
    $region6: #{tpu_custom_call.1} parent=1 // loop_footer
      %s18 = sadd.s32 1, %s14
    $region7: #{tpu_custom_call.1} parent=1 // loop_footer_branch
      %13 = sbr.rel target = $region3
    $region8: #{tpu_custom_call.1} parent=1 // loop_exit
      _
    %726 = vsyncpa [#allocation6], 1
    %s727 = scalar_lea.sflag [#allocation6], 1
    %728 = vsyncpa %s727, 1

</llo_original>
